<compile_context>
chip_gen: v7x
topology: tpu7x:2x2x1
jax: 0.10.0
libtpu: 0.0.40
codegen_flags: <defaults>
</compile_context>

<pallas_src>
import functools
import math

import jax
import jax.numpy as jnp
from jax.experimental import pallas as pl
from jax.experimental.pallas import tpu as pltpu


# ---------------------------------------------------------------------------
# Table construction (setup time; mirrors the torch module's buffers)
# ---------------------------------------------------------------------------

def make_rope_tables(theta: float, d_k: int, max_seq_len: int):
    """Half-width sin/cos tables, shape (max_seq_len, d_k // 2), as in the module."""
    dim_indices = jnp.arange(0, d_k, 2, dtype=jnp.float32)
    inv_freq = 1.0 / (theta ** (dim_indices / d_k))
    positions = jnp.arange(max_seq_len, dtype=jnp.float32)
    angles = positions[:, None] * inv_freq[None, :]          # (S, d_k//2)
    return jnp.sin(angles), jnp.cos(angles)


def make_rope_kernel_tables(sin_table, cos_table, dtype=jnp.float32):
    """Full-width, sign-folded tables, built once on the tiny (S, d_k//2) buffers.

    cos_full[p, 2j] = cos_full[p, 2j+1] = cos(theta_pj)
    sin_signed[p, 2j] = -sin(theta_pj);  sin_signed[p, 2j+1] = +sin(theta_pj)
    so the kernel blend is simply  x * cos_full + pair_swap(x) * sin_signed.
    Keep dtype=float32 for best accuracy; pass bf16 to halve the fallback
    streams for bf16 models (the blend itself is always done in f32).
    """
    s, h = sin_table.shape
    cos_full = jnp.repeat(cos_table, 2, axis=-1).astype(dtype)
    sin_signed = jnp.stack([-sin_table, sin_table], axis=-1).reshape(s, 2 * h).astype(dtype)
    return cos_full, sin_signed


# ---------------------------------------------------------------------------
# Kernel bodies
# ---------------------------------------------------------------------------

def _pair_partner(x):
    """partner[:, 2j] = x[:, 2j+1]; partner[:, 2j+1] = x[:, 2j]   (2-D input).

    Two XLU lane rotations + an even/odd lane select.  Written so that it is
    correct regardless of pltpu.roll's rotation-direction convention: the
    prev/next roles of the two rotations are resolved by rolling a lane iota,
    and the element that wrapped around the row edge is always on a lane the
    parity select discards (holds for any even lane width).
    """
    rows, n = x.shape
    assert n % 2 == 0, "pair swap requires an even lane width"
    lane = jax.lax.broadcasted_iota(jnp.int32, (rows, n), 1)
    is_even = (lane & 1) == 0
    r_a = pltpu.roll(x, shift=1, axis=1)
    r_b = pltpu.roll(x, shift=n - 1, axis=1)
    rolled_lane = pltpu.roll(lane, shift=1, axis=1)
    # True everywhere iff pltpu.roll(v, 1)[i] == v[i-1] (the jnp.roll convention).
    a_is_prev = rolled_lane == jnp.where(lane == 0, n - 1, lane - 1)
    take_a = jnp.logical_xor(is_even, a_is_prev)   # want "next" on even lanes
    return jnp.where(take_a, r_a, r_b)


def _rope_resident_kernel(pos_ref, cos_tab_ref, sin_tab_ref, x_ref, o_ref, *,
                          split_terms):
    """Fast path: VMEM-resident tables, in-kernel per-row gather, f32 blend.

    Blocks:
      pos_ref : (tile, 1)  int32   per-row token positions
      cos/sin : (S, d_k)   f32     full tables, resident across the grid
      x_ref   : (tile, d_k)        input rows
    """
    x = x_ref[...].astype(jnp.float32)                          # (tile, d_k)
    tile = x.shape[0]
    s_rows = cos_tab_ref.shape[0]
    pos = pos_ref[...]                                          # (tile, 1)
    steps = jax.lax.broadcasted_iota(jnp.int32, (tile, s_rows), 1)
    onehot = jnp.where(steps == pos, 1.0, 0.0).astype(jnp.bfloat16)  # exact 0/1

    def gather_rows(tab_ref):
        # Row gather as a one-hot MXU matmul; the f32 table is split into
        # bf16 terms so the bf16 passes reconstruct f32 values (re-split per
        # step is a tiny VPU cost, hidden under the HBM stream).
        rem = tab_ref[...].astype(jnp.float32)                  # (S, d_k)
        acc = jnp.zeros((tile, rem.shape[-1]), jnp.float32)
        for _ in range(split_terms):
            part = rem.astype(jnp.bfloat16)
            acc = acc + jnp.dot(onehot, part, preferred_element_type=jnp.float32)
            rem = rem - part.astype(jnp.float32)
        return acc

    cos_rows = gather_rows(cos_tab_ref)
    sin_rows = gather_rows(sin_tab_ref)
    o_ref[...] = (x * cos_rows + _pair_partner(x) * sin_rows).astype(o_ref.dtype)


def _rope_stream_kernel(x_ref, cos_ref, sin_ref, o_ref):
    """Fallback path: precomputed cos/sin streams; f32 blend, cast on store."""
    x = x_ref[...].astype(jnp.float32)
    c = cos_ref[...].astype(jnp.float32)
    s = sin_ref[...].astype(jnp.float32)
    o_ref[...] = (x * c + _pair_partner(x) * s).astype(o_ref.dtype)


# ---------------------------------------------------------------------------
# Wrapper
# ---------------------------------------------------------------------------

_RESIDENT_TABLE_MAX_ROWS = 512            # beyond this the one-hot gather isn't free
_RESIDENT_TABLE_MAX_BYTES = 4 * 1024 * 1024


def _sublane_multiple(dtype) -> int:
    # 8 for f32, 16 for bf16/f16, 32 for int8/fp8 -> unmasked, fully packed stores.
    return max(8, 32 // jnp.dtype(dtype).itemsize)


def _vmem_budgets():
    """(working-set budget, scoped vmem limit) in bytes, generation-aware."""
    cap = None
    try:
        cap = getattr(pltpu.get_tpu_info(), "vmem_capacity_bytes", None)
    except Exception:
        cap = None
    if cap is not None and cap >= 100 * 2**20:    # v5e / v6e: 128 MiB VMEM
        return 32 * 2**20, 64 * 2**20
    # v7x (64 MiB physical) or unknown: stay conservative.
    return 16 * 2**20, 32 * 2**20


def _round_tile(n_rows: int, want: int, sub: int) -> int:
    tile = max(sub, (want // sub) * sub)
    return n_rows if tile >= n_rows else tile


@functools.partial(jax.jit,
                   static_argnames=("row_tile", "use_resident_tables", "inplace"))
def rope_pallas(x, token_positions, cos_full_table, sin_signed_table, *,
                row_tile: int = 4096, use_resident_tables=None, inplace: bool = False):
    """x: (..., seq_len, d_k); token_positions: broadcastable to x.shape[:-1]."""
    orig_shape = x.shape
    d_k = orig_shape[-1]
    if d_k % 2 != 0:
        raise ValueError("RoPE requires an even d_k.")
    dtype = x.dtype
    itemsize = jnp.dtype(dtype).itemsize
    n_rows = math.prod(orig_shape[:-1]) if len(orig_shape) > 1 else 1
    s_rows, tab_d = cos_full_table.shape
    if tab_d != d_k:
        raise ValueError("table width does not match d_k")

    pos_rows = (jnp.broadcast_to(token_positions, orig_shape[:-1])
                .reshape(n_rows, 1).astype(jnp.int32))

    vmem_budget, vmem_limit = _vmem_budgets()
    sub = _sublane_multiple(dtype)

    if use_resident_tables is None:
        tab_bytes = 2 * s_rows * d_k * jnp.dtype(cos_full_table.dtype).itemsize
        use_resident_tables = (s_rows <= _RESIDENT_TABLE_MAX_ROWS
                               and tab_bytes <= _RESIDENT_TABLE_MAX_BYTES)

    if use_resident_tables:
        # ---- fast path: x rows + thin int32 positions are the only big HBM streams.
        x2 = x.reshape(n_rows, d_k)
        split_terms = 3 if itemsize >= 4 else 1   # f32: exact gather; bf16: 1 pass

        per_row = 2 * (2 * d_k * itemsize + 4)                  # pipelined x/out/pos
        per_row += 4 * (s_rows + (2 + split_terms) * d_k)       # onehot + f32 temps
        table_vmem = 2 * 2 * s_rows * d_k * 4
        tile = _round_tile(
            n_rows,
            min(row_tile, max(sub, (vmem_budget - table_vmem) // per_row)),
            sub)
        grid = (pl.cdiv(n_rows, tile),)

        row_spec = pl.BlockSpec((tile, d_k), lambda i: (i, 0))
        pos_spec = pl.BlockSpec((tile, 1), lambda i: (i, 0))
        tab_spec = pl.BlockSpec((s_rows, d_k), lambda i: (0, 0))   # VMEM-resident

        kernel = functools.partial(_rope_resident_kernel, split_terms=split_terms)
        extra = {"input_output_aliases": {3: 0}} if inplace else {}
        out = pl.pallas_call(
            kernel,
            out_shape=jax.ShapeDtypeStruct((n_rows, d_k), dtype),
            grid_spec=pltpu.PrefetchScalarGridSpec(
                num_scalar_prefetch=0,
                grid=grid,
                in_specs=[pos_spec, tab_spec, tab_spec, row_spec],
                out_specs=row_spec,
            ),
            compiler_params=pltpu.CompilerParams(
                dimension_semantics=(pltpu.PARALLEL,),
                vmem_limit_bytes=vmem_limit,
            ),
            cost_estimate=pl.CostEstimate(
                flops=n_rows * (4 * split_terms * s_rows * d_k + 8 * d_k),
                transcendentals=0,
                bytes_accessed=n_rows * (2 * d_k * itemsize + 4) + 2 * s_rows * d_k * 4,
            ),
            **extra,
        )(pos_rows, cos_full_table, sin_signed_table, x2)
        return out.reshape(orig_shape)

    # ---- fallback: precomputed per-row cos/sin streams (very large tables). ----
    # Cast the *tiny* tables (not the gathered slabs) to the compute dtype, then
    # gather once per logical row.
    pos_flat = pos_rows[:, 0]
    cos_stream = cos_full_table.astype(dtype)[pos_flat]          # (n_rows, d_k)
    sin_stream = sin_signed_table.astype(dtype)[pos_flat]

    total = n_rows * d_k
    if d_k % 128 == 0:
        lane = d_k
    elif total % 128 == 0:
        lane = 128            # any even lane width is safe (see _pair_partner)
    else:
        lane = d_k            # masked tail stores; still correct
    assert lane % 2 == 0
    rows2 = total // lane

    x2 = x.reshape(rows2, lane)
    cos2 = cos_stream.reshape(rows2, lane)
    sin2 = sin_stream.reshape(rows2, lane)

    per_row = 2 * 4 * lane * itemsize                            # 4 streams, 2 buffers
    tile = _round_tile(rows2, min(row_tile, max(sub, vmem_budget // per_row)), sub)
    grid = (pl.cdiv(rows2, tile),)
    spec = pl.BlockSpec((tile, lane), lambda i: (i, 0))

    extra = {"input_output_aliases": {0: 0}} if inplace else {}
    out = pl.pallas_call(
        _rope_stream_kernel,
        out_shape=jax.ShapeDtypeStruct((rows2, lane), dtype),
        grid_spec=pltpu.PrefetchScalarGridSpec(
            num_scalar_prefetch=0,
            grid=grid,
            in_specs=[spec, spec, spec],
            out_specs=spec,
        ),
        compiler_params=pltpu.CompilerParams(
            dimension_semantics=(pltpu.PARALLEL,),
            vmem_limit_bytes=vmem_limit,
        ),
        cost_estimate=pl.CostEstimate(
            flops=8 * total,
            transcendentals=0,
            bytes_accessed=4 * total * itemsize,
        ),
        **extra,
    )(x2, cos2, sin2)
    return out.reshape(orig_shape)


# ---------------------------------------------------------------------------
# Pure-JAX reference (matches the PyTorch module semantics)
# ---------------------------------------------------------------------------

def rope_reference(x, token_positions, sin_table, cos_table):
    sin = jnp.repeat(sin_table[token_positions], 2, axis=-1)
    cos = jnp.repeat(cos_table[token_positions], 2, axis=-1)
    d_k = x.shape[-1]
    xp = x.reshape(*x.shape[:-1], d_k // 2, 2)
    k1, k2 = xp[..., 0], xp[..., 1]
    x_rot = jnp.stack([-k2, k1], axis=-1).reshape(x.shape)
    return (x * cos + x_rot * sin).astype(x.dtype)


if __name__ == "__main__":
    theta = 10000.0
    d_k = 128
    max_seq_len = 16
    batch = 2
    seq_len = 8

    key = jax.random.PRNGKey(0)
    kx, kp = jax.random.split(key)
    x = jax.random.normal(kx, (batch, seq_len, d_k), dtype=jnp.float32)
    token_positions = jax.random.randint(
        kp, (batch, seq_len), minval=0, maxval=max_seq_len, dtype=jnp.int32)

    sin_table, cos_table = make_rope_tables(theta, d_k, max_seq_len)
    cos_full_table, sin_signed_table = make_rope_kernel_tables(sin_table, cos_table)

    ref = rope_reference(x, token_positions, sin_table, cos_table)

    # Fast path: thin position stream + VMEM-resident tables (no cos/sin slabs).
    out = jax.block_until_ready(
        rope_pallas(x, token_positions, cos_full_table, sin_signed_table))
    assert out.shape == x.shape and out.dtype == x.dtype
    assert jnp.allclose(out, ref, atol=1e-5, rtol=1e-5), "resident-table path mismatch"

    # Fallback path (precomputed streams), used for very large max_seq_len.
    out2 = jax.block_until_ready(
        rope_pallas(x, token_positions, cos_full_table, sin_signed_table,
                    use_resident_tables=False))
    assert jnp.allclose(out2, ref, atol=1e-5, rtol=1e-5), "stream path mismatch"

    print("KERNEL_OK")
</pallas_src>

<mosaic_0001>
module attributes {stable_mosaic.version = 11 : i64} {
  func.func @_rope_resident_kernel(%arg0: i32, %arg1: memref<16x1xi32, #tpu.memory_space<vmem>>, %arg2: memref<16x128xf32, #tpu.memory_space<vmem>>, %arg3: memref<16x128xf32, #tpu.memory_space<vmem>>, %arg4: memref<16x128xf32, #tpu.memory_space<vmem>>, %arg5: memref<16x128xf32, #tpu.memory_space<vmem>>) attributes {dimension_semantics = [#tpu.dimension_semantics<parallel>], iteration_bounds = array<i64: 1>, scalar_prefetch = 0 : i64, scratch_operands = 0 : i64, tpu.core_type = #tpu.core_type<tc>, window_params = [{transform_indices = @transform_0, window_bounds = array<i64: 16, 1>}, {pipeline_mode = #tpu.pipeline_mode<synchronous>, transform_indices = @transform_1, window_bounds = array<i64: 16, 128>}, {pipeline_mode = #tpu.pipeline_mode<synchronous>, transform_indices = @transform_2, window_bounds = array<i64: 16, 128>}, {transform_indices = @transform_3, window_bounds = array<i64: 16, 128>}, {transform_indices = @transform_4, window_bounds = array<i64: 16, 128>}]} {
    %c0 = arith.constant 0 : index
    %c0_0 = arith.constant 0 : index
    %0 = vector.load %arg4[%c0, %c0_0] : memref<16x128xf32, #tpu.memory_space<vmem>>, vector<16x128xf32>
    %c0_1 = arith.constant 0 : index
    %c0_2 = arith.constant 0 : index
    %1 = vector.load %arg1[%c0_1, %c0_2] : memref<16x1xi32, #tpu.memory_space<vmem>>, vector<16x1xi32>
    %2 = tpu.iota {dimensions = array<i32: 1>} : vector<16x16xi32>
    %3 = vector.broadcast %1 : vector<16x1xi32> to vector<16x16xi32>
    %4 = arith.cmpi eq, %2, %3 : vector<16x16xi32>
    %cst = arith.constant 1.000000e+00 : f32
    %cst_3 = arith.constant 0.000000e+00 : f32
    %5 = vector.broadcast %cst : f32 to vector<16x16xf32>
    %6 = vector.broadcast %cst_3 : f32 to vector<16x16xf32>
    %7 = arith.select %4, %5, %6 : vector<16x16xi1>, vector<16x16xf32>
    %8 = arith.truncf %7 : vector<16x16xf32> to vector<16x16xbf16>
    %c0_4 = arith.constant 0 : index
    %c0_5 = arith.constant 0 : index
    %9 = vector.load %arg2[%c0_4, %c0_5] : memref<16x128xf32, #tpu.memory_space<vmem>>, vector<16x128xf32>
    %cst_6 = arith.constant 0.000000e+00 : f32
    %10 = vector.broadcast %cst_6 : f32 to vector<16x128xf32>
    %11 = arith.truncf %9 : vector<16x128xf32> to vector<16x128xbf16>
    %cst_7 = arith.constant dense<0.000000e+00> : vector<16x128xf32>
    %12 = tpu.matmul %8, %11, %cst_7 {dimension_numbers = #tpu.dot_dimension_numbers<[1], [0], [0], [1], [0, 0, 1, 1], [], []>} : vector<16x16xbf16>, vector<16x128xbf16>, vector<16x128xf32> -> vector<16x128xf32>
    %13 = arith.addf %10, %12 : vector<16x128xf32>
    %14 = arith.extf %11 : vector<16x128xbf16> to vector<16x128xf32>
    %15 = arith.subf %9, %14 : vector<16x128xf32>
    %16 = arith.truncf %15 : vector<16x128xf32> to vector<16x128xbf16>
    %cst_8 = arith.constant dense<0.000000e+00> : vector<16x128xf32>
    %17 = tpu.matmul %8, %16, %cst_8 {dimension_numbers = #tpu.dot_dimension_numbers<[1], [0], [0], [1], [0, 0, 1, 1], [], []>} : vector<16x16xbf16>, vector<16x128xbf16>, vector<16x128xf32> -> vector<16x128xf32>
    %18 = arith.addf %13, %17 : vector<16x128xf32>
    %19 = arith.extf %16 : vector<16x128xbf16> to vector<16x128xf32>
    %20 = arith.subf %15, %19 : vector<16x128xf32>
    %21 = arith.truncf %20 : vector<16x128xf32> to vector<16x128xbf16>
    %cst_9 = arith.constant dense<0.000000e+00> : vector<16x128xf32>
    %22 = tpu.matmul %8, %21, %cst_9 {dimension_numbers = #tpu.dot_dimension_numbers<[1], [0], [0], [1], [0, 0, 1, 1], [], []>} : vector<16x16xbf16>, vector<16x128xbf16>, vector<16x128xf32> -> vector<16x128xf32>
    %23 = arith.addf %18, %22 : vector<16x128xf32>
    %c0_10 = arith.constant 0 : index
    %c0_11 = arith.constant 0 : index
    %24 = vector.load %arg3[%c0_10, %c0_11] : memref<16x128xf32, #tpu.memory_space<vmem>>, vector<16x128xf32>
    %cst_12 = arith.constant 0.000000e+00 : f32
    %25 = vector.broadcast %cst_12 : f32 to vector<16x128xf32>
    %26 = arith.truncf %24 : vector<16x128xf32> to vector<16x128xbf16>
    %cst_13 = arith.constant dense<0.000000e+00> : vector<16x128xf32>
    %27 = tpu.matmul %8, %26, %cst_13 {dimension_numbers = #tpu.dot_dimension_numbers<[1], [0], [0], [1], [0, 0, 1, 1], [], []>} : vector<16x16xbf16>, vector<16x128xbf16>, vector<16x128xf32> -> vector<16x128xf32>
    %28 = arith.addf %25, %27 : vector<16x128xf32>
    %29 = arith.extf %26 : vector<16x128xbf16> to vector<16x128xf32>
    %30 = arith.subf %24, %29 : vector<16x128xf32>
    %31 = arith.truncf %30 : vector<16x128xf32> to vector<16x128xbf16>
    %cst_14 = arith.constant dense<0.000000e+00> : vector<16x128xf32>
    %32 = tpu.matmul %8, %31, %cst_14 {dimension_numbers = #tpu.dot_dimension_numbers<[1], [0], [0], [1], [0, 0, 1, 1], [], []>} : vector<16x16xbf16>, vector<16x128xbf16>, vector<16x128xf32> -> vector<16x128xf32>
    %33 = arith.addf %28, %32 : vector<16x128xf32>
    %34 = arith.extf %31 : vector<16x128xbf16> to vector<16x128xf32>
    %35 = arith.subf %30, %34 : vector<16x128xf32>
    %36 = arith.truncf %35 : vector<16x128xf32> to vector<16x128xbf16>
    %cst_15 = arith.constant dense<0.000000e+00> : vector<16x128xf32>
    %37 = tpu.matmul %8, %36, %cst_15 {dimension_numbers = #tpu.dot_dimension_numbers<[1], [0], [0], [1], [0, 0, 1, 1], [], []>} : vector<16x16xbf16>, vector<16x128xbf16>, vector<16x128xf32> -> vector<16x128xf32>
    %38 = arith.addf %33, %37 : vector<16x128xf32>
    %39 = arith.mulf %0, %23 : vector<16x128xf32>
    %40 = tpu.iota {dimensions = array<i32: 1>} : vector<16x128xi32>
    %c1_i32 = arith.constant 1 : i32
    %41 = vector.broadcast %c1_i32 : i32 to vector<16x128xi32>
    %42 = arith.andi %40, %41 : vector<16x128xi32>
    %c0_i32 = arith.constant 0 : i32
    %43 = vector.broadcast %c0_i32 : i32 to vector<16x128xi32>
    %44 = arith.cmpi eq, %42, %43 : vector<16x128xi32>
    %c1_i32_16 = arith.constant 1 : i32
    %45 = tpu.dynamic_rotate %0 by %c1_i32_16 dim 1 : vector<16x128xf32>, i32 -> vector<16x128xf32>
    %c127_i32 = arith.constant 127 : i32
    %46 = tpu.dynamic_rotate %0 by %c127_i32 dim 1 : vector<16x128xf32>, i32 -> vector<16x128xf32>
    %c1_i32_17 = arith.constant 1 : i32
    %47 = tpu.dynamic_rotate %40 by %c1_i32_17 dim 1 : vector<16x128xi32>, i32 -> vector<16x128xi32>
    %c0_i32_18 = arith.constant 0 : i32
    %48 = vector.broadcast %c0_i32_18 : i32 to vector<16x128xi32>
    %49 = arith.cmpi eq, %40, %48 : vector<16x128xi32>
    %c1_i32_19 = arith.constant 1 : i32
    %50 = vector.broadcast %c1_i32_19 : i32 to vector<16x128xi32>
    %51 = arith.subi %40, %50 : vector<16x128xi32>
    %c127_i32_20 = arith.constant 127 : i32
    %52 = vector.broadcast %c127_i32_20 : i32 to vector<16x128xi32>
    %53 = arith.select %49, %52, %51 : vector<16x128xi1>, vector<16x128xi32>
    %54 = arith.cmpi eq, %47, %53 : vector<16x128xi32>
    %55 = arith.xori %44, %54 : vector<16x128xi1>
    %56 = arith.select %55, %45, %46 : vector<16x128xi1>, vector<16x128xf32>
    %57 = arith.mulf %56, %38 : vector<16x128xf32>
    %58 = arith.addf %39, %57 : vector<16x128xf32>
    %c0_21 = arith.constant 0 : index
    %c0_22 = arith.constant 0 : index
    %59 = vector.load %arg5[%c0_21, %c0_22] : memref<16x128xf32, #tpu.memory_space<vmem>>, vector<16x128xf32>
    tpu.vector_store %arg5[%c0_21, %c0_22], %58 {strides = array<i32>} : memref<16x128xf32, #tpu.memory_space<vmem>>, vector<16x128xf32>,
    return
  }
  func.func @transform_0(%arg0: i32) -> (i32, i32) {
    %c0_i32 = arith.constant 0 : i32
    %c0_i32_0 = arith.constant 0 : i32
    return %arg0, %c0_i32 : i32, i32
  }
  func.func @transform_1(%arg0: i32) -> (i32, i32) {
    %c0_i32 = arith.constant 0 : i32
    %c0_i32_0 = arith.constant 0 : i32
    %c0_i32_1 = arith.constant 0 : i32
    return %c0_i32, %c0_i32_0 : i32, i32
  }
  func.func @transform_2(%arg0: i32) -> (i32, i32) {
    %c0_i32 = arith.constant 0 : i32
    %c0_i32_0 = arith.constant 0 : i32
    %c0_i32_1 = arith.constant 0 : i32
    return %c0_i32, %c0_i32_0 : i32, i32
  }
  func.func @transform_3(%arg0: i32) -> (i32, i32) {
    %c0_i32 = arith.constant 0 : i32
    %c0_i32_0 = arith.constant 0 : i32
    return %arg0, %c0_i32 : i32, i32
  }
  func.func @transform_4(%arg0: i32) -> (i32, i32) {
    %c0_i32 = arith.constant 0 : i32
    %c0_i32_0 = arith.constant 0 : i32
    return %arg0, %c0_i32 : i32, i32
  }
}

</mosaic_0001>

<llo_original>
// kernel: rope_pallas.1
$region0: #{rope_pallas.1}
  #allocation0 [shape = 'u32[]', space=smem, size = 0x4, offset = 0x4, fixed_abs, tag = 'smem constant byte address 0x4 - core index']
  #allocation1 [shape = 'u32[144,128]{1,0:T(1,128)}', space=vmem, size = 0x12000, scoped, tag = 'internal scratch']
  %s0 = inlined_call_operand.vmem [shape: s32[16,1], index: 0, kind: input, shape index: {}]
  %s1 = inlined_call_operand.vmem [shape: f32[16,128], index: 1, kind: input, shape index: {}]
  %s2 = inlined_call_operand.vmem [shape: f32[16,128], index: 2, kind: input, shape index: {}]
  %s3 = inlined_call_operand.hbm [shape: f32[16,128], index: 3, kind: input, shape index: {}]
  %s4 = inlined_call_operand.hbm [shape: f32[16,128], index: 4, kind: output, shape index: {}]
  %s5 = sld [smem:[#allocation0]]
  $region30: #{rope_pallas.1} parent=0
    _
  %s7 = ssub.s32 1, %s5
  %s8 = scalar_select 0, %s7, %s5
  $region1: #{rope_pallas.1} parent=0
    #allocation2 [shape = 'u8[8192]{0}', space=vmem, size = 0x2000, scoped, tag = 'input window, operand 3, single buffered']
    #allocation3 [shape = 's32[1]{0}', space=sflag, size = 0x4, scoped, tag = 'scoped memory for rope_pallas.1']
    #allocation4 [shape = 's32[1]{0}', space=sflag, size = 0x4, scoped, tag = 'scoped memory for rope_pallas.1']
    #allocation5 [shape = 'u8[8192]{0}', space=vmem, size = 0x2000, scoped, tag = 'output window, operand 0, single buffered']
    %9 = vsyncpa [#allocation3], 0
    %10 = vsyncpa [#allocation4], 0
    // Predicated region
    $region2: #{rope_pallas.1} parent=1 // pred_check
      _
    $region3: #{rope_pallas.1} parent=1 // pred_check_branch
      %12 = sbr.rel (0) target = $region5
    $region4: #{rope_pallas.1} parent=1 // pred_region
      _
    $region5: #{rope_pallas.1} parent=1 // pred_fallthru
      _
    // Predicated region
    $region6: #{rope_pallas.1} parent=1 // pred_check
      _
    $region7: #{rope_pallas.1} parent=1 // pred_check_branch
      %14 = sbr.rel (0) target = $region9
    $region8: #{rope_pallas.1} parent=1 // pred_region
      _
    $region9: #{rope_pallas.1} parent=1 // pred_fallthru
      _
    // Predicated region
    $region10: #{rope_pallas.1} parent=1 // pred_check
      _
    $region11: #{rope_pallas.1} parent=1 // pred_check_branch
      %16 = sbr.rel (0) target = $region13
    $region12: #{rope_pallas.1} parent=1 // pred_region
      _
    $region13: #{rope_pallas.1} parent=1 // pred_fallthru
      _
    // Predicated region
    $region14: #{rope_pallas.1} parent=1 // pred_check
      _
    $region15: #{rope_pallas.1} parent=1 // pred_check_branch
      %18 = sbr.rel (0) target = $region17
    $region16: #{rope_pallas.1} parent=1 // pred_region
      %s20 = ssub.s32 256, 256
      %21 = vsyncadd [#allocation3], %s20
      %s22 = sshll.u32 [#allocation2], 4
      %s23 = int_to_ptr.vmem [resolvable:$true] %s22
      %28 = dma.hbm_to_vmem [thread:$0]  %s3, 256, %s23, [#allocation3], 128, 128, 8
    $region17: #{rope_pallas.1} parent=1 // pred_fallthru
      _
    // Predicated region
    $region18: #{rope_pallas.1} parent=1 // pred_check
      _
    $region19: #{rope_pallas.1} parent=1 // pred_check_branch
      %30 = sbr.rel (0) target = $region21
    $region20: #{rope_pallas.1} parent=1 // pred_region
      %31 = dma.done [#allocation3], 256
    $region21: #{rope_pallas.1} parent=1 // pred_fallthru
      _
    %v33 = vld [vmem:[#allocation2] sm:$0xff]
    %v34 = vld [vmem:[#allocation2 + $0x8] sm:$0xff]
    %v35 = vld [vmem:[%s0] sm:$0xff]
    %v36 = vld [vmem:[%s0 + $0x8] sm:$0xff]
    %v37 = vlaneseq
    %v38 = vand.u32 %v37, 127
    %39 = vset.pattern.permute.xlu0 0
    %40 = vperm.xlu0 %39, %v35
    %v41 = vpop.permute.xlu0 %40
    %42 = vset.pattern.permute.xlu0 0
    %43 = vperm.xlu0 %42, %v36
    %v44 = vpop.permute.xlu0 %43
    %vm45 = vcmp.eq.s32.totalorder %v38, %v41
    %vm46 = vcmp.eq.s32.totalorder %v38, %v44
    %v47 = vsel %vm45, 1.0, 0.0
    %v48 = vsel %vm46, 1.0, 0.0
    %v49 = vpack.c.bf16 %v48, %v47
    %v50 = vld [vmem:[%s1] sm:$0xff]
    %v51 = vld [vmem:[%s1 + $0x8] sm:$0xff]
    %v52 = vpack.c.bf16 %v51, %v50
    %v53 = vunpack.c.l.bf16 %v52
    %v54 = vunpack.c.h.bf16 %v52
    %v55 = vsub.f32 %v50, %v53
    %v56 = vsub.f32 %v51, %v54
    %v57 = vpack.c.bf16 %v56, %v55
    %vm58 = vcmask 130048
    %v60 = vsel %vm58, %v49, 0
    %62 = vmatprep.subr.bf16.mxu0 0
    %63 = vmatpush1.bf16.msra.mxu0 %v57
    %64 = vmatprep.subr.bf16.mxu0 0
    %65 = vmatpush1.bf16.msra.mxu0 0
    %66 = vmatprep.subr.bf16.mxu0 0
    %67 = vmatpush1.bf16.msra.mxu0 0
    %68 = vmatprep.subr.bf16.mxu0 0
    %69 = vmatpush1.bf16.msra.mxu0 0
    %70 = vmatprep.subr.bf16.mxu0 0
    %71 = vmatpush1.bf16.msra.mxu0 0
    %72 = vmatprep.subr.bf16.mxu0 0
    %73 = vmatpush1.bf16.msra.mxu0 0
    %74 = vmatprep.subr.bf16.mxu0 0
    %75 = vmatpush1.bf16.msra.mxu0 0
    %76 = vmatprep.subr.bf16.mxu0 0
    %77 = vmatpush1.bf16.msra.mxu0 0
    %78 = vmatprep.subr.bf16.mxu0 0
    %79 = vmatpush1.bf16.msra.mxu0 0
    %80 = vmatprep.subr.bf16.mxu0 0
    %81 = vmatpush1.bf16.msra.mxu0 0
    %82 = vmatprep.subr.bf16.mxu0 0
    %83 = vmatpush1.bf16.msra.mxu0 0
    %84 = vmatprep.subr.bf16.mxu0 0
    %85 = vmatpush1.bf16.msra.mxu0 0
    %86 = vmatprep.subr.bf16.mxu0 0
    %87 = vmatpush1.bf16.msra.mxu0 0
    %88 = vmatprep.subr.bf16.mxu0 0
    %89 = vmatpush1.bf16.msra.mxu0 0
    %90 = vmatprep.subr.bf16.mxu0 0
    %91 = vmatpush1.bf16.msra.mxu0 0
    %92 = vmatprep.subr.bf16.mxu0 0
    %93 = vmatpush1.bf16.msra.mxu0 0
    %94 = vmatprep.mubr.bf16.mxu0 0
    %95 = vmatmul.mubr.bf16.gmra.mrb[0].mxu0 %v60
    %v96 = vpop.f32.mrb[0].mxu0
    %v97 = vadd.f32 0.0, %v96
    %v98 = vpop.f32.mrb[0].mxu0
    %v99 = vpop.f32.mrb[0].mxu0
    %v100 = vadd.f32 0.0, %v99
    %v101 = vpop.f32.mrb[0].mxu0
    %102 = vdwg.mxu0
    %103 = vmatprep.subr.bf16.mxu0 0
    %104 = vmatpush1.bf16.msra.mxu0 %v52
    %105 = vmatprep.subr.bf16.mxu0 0
    %106 = vmatpush1.bf16.msra.mxu0 0
    %107 = vmatprep.subr.bf16.mxu0 0
    %108 = vmatpush1.bf16.msra.mxu0 0
    %109 = vmatprep.subr.bf16.mxu0 0
    %110 = vmatpush1.bf16.msra.mxu0 0
    %111 = vmatprep.subr.bf16.mxu0 0
    %112 = vmatpush1.bf16.msra.mxu0 0
    %113 = vmatprep.subr.bf16.mxu0 0
    %114 = vmatpush1.bf16.msra.mxu0 0
    %115 = vmatprep.subr.bf16.mxu0 0
    %116 = vmatpush1.bf16.msra.mxu0 0
    %117 = vmatprep.subr.bf16.mxu0 0
    %118 = vmatpush1.bf16.msra.mxu0 0
    %119 = vmatprep.subr.bf16.mxu0 0
    %120 = vmatpush1.bf16.msra.mxu0 0
    %121 = vmatprep.subr.bf16.mxu0 0
    %122 = vmatpush1.bf16.msra.mxu0 0
    %123 = vmatprep.subr.bf16.mxu0 0
    %124 = vmatpush1.bf16.msra.mxu0 0
    %125 = vmatprep.subr.bf16.mxu0 0
    %126 = vmatpush1.bf16.msra.mxu0 0
    %127 = vmatprep.subr.bf16.mxu0 0
    %128 = vmatpush1.bf16.msra.mxu0 0
    %129 = vmatprep.subr.bf16.mxu0 0
    %130 = vmatpush1.bf16.msra.mxu0 0
    %131 = vmatprep.subr.bf16.mxu0 0
    %132 = vmatpush1.bf16.msra.mxu0 0
    %133 = vmatprep.subr.bf16.mxu0 0
    %134 = vmatpush1.bf16.msra.mxu0 0
    %135 = vmatprep.mubr.bf16.mxu0 0
    %136 = vmatmul.mubr.bf16.gmra.mrb[0].mxu0 %v60
    %v137 = vpop.f32.mrb[0].mxu0
    %v138 = vadd.f32 %v97, %v137
    %v139 = vpop.f32.mrb[0].mxu0
    %v140 = vpop.f32.mrb[0].mxu0
    %v141 = vadd.f32 %v100, %v140
    %v142 = vpop.f32.mrb[0].mxu0
    %143 = vdwg.mxu0
    %v144 = vunpack.c.l.bf16 %v57
    %v145 = vunpack.c.h.bf16 %v57
    %v146 = vsub.f32 %v55, %v144
    %v147 = vsub.f32 %v56, %v145
    %v148 = vpack.c.bf16 %v147, %v146
    %149 = vmatprep.subr.bf16.mxu0 0
    %150 = vmatpush1.bf16.msra.mxu0 %v148
    %151 = vmatprep.subr.bf16.mxu0 0
    %152 = vmatpush1.bf16.msra.mxu0 0
    %153 = vmatprep.subr.bf16.mxu0 0
    %154 = vmatpush1.bf16.msra.mxu0 0
    %155 = vmatprep.subr.bf16.mxu0 0
    %156 = vmatpush1.bf16.msra.mxu0 0
    %157 = vmatprep.subr.bf16.mxu0 0
    %158 = vmatpush1.bf16.msra.mxu0 0
    %159 = vmatprep.subr.bf16.mxu0 0
    %160 = vmatpush1.bf16.msra.mxu0 0
    %161 = vmatprep.subr.bf16.mxu0 0
    %162 = vmatpush1.bf16.msra.mxu0 0
    %163 = vmatprep.subr.bf16.mxu0 0
    %164 = vmatpush1.bf16.msra.mxu0 0
    %165 = vmatprep.subr.bf16.mxu0 0
    %166 = vmatpush1.bf16.msra.mxu0 0
    %167 = vmatprep.subr.bf16.mxu0 0
    %168 = vmatpush1.bf16.msra.mxu0 0
    %169 = vmatprep.subr.bf16.mxu0 0
    %170 = vmatpush1.bf16.msra.mxu0 0
    %171 = vmatprep.subr.bf16.mxu0 0
    %172 = vmatpush1.bf16.msra.mxu0 0
    %173 = vmatprep.subr.bf16.mxu0 0
    %174 = vmatpush1.bf16.msra.mxu0 0
    %175 = vmatprep.subr.bf16.mxu0 0
    %176 = vmatpush1.bf16.msra.mxu0 0
    %177 = vmatprep.subr.bf16.mxu0 0
    %178 = vmatpush1.bf16.msra.mxu0 0
    %179 = vmatprep.subr.bf16.mxu0 0
    %180 = vmatpush1.bf16.msra.mxu0 0
    %181 = vmatprep.mubr.bf16.mxu0 0
    %182 = vmatmul.mubr.bf16.gmra.mrb[0].mxu0 %v60
    %v183 = vpop.f32.mrb[0].mxu0
    %v184 = vadd.f32 0.0, %v183
    %v185 = vpop.f32.mrb[0].mxu0
    %v186 = vpop.f32.mrb[0].mxu0
    %v187 = vadd.f32 0.0, %v186
    %v188 = vpop.f32.mrb[0].mxu0
    %189 = vdwg.mxu0
    %v190 = vadd.f32 %v138, %v184
    %v191 = vadd.f32 %v141, %v187
    %v192 = vld [vmem:[%s2] sm:$0xff]
    %v193 = vld [vmem:[%s2 + $0x8] sm:$0xff]
    %v194 = vpack.c.bf16 %v193, %v192
    %v195 = vunpack.c.l.bf16 %v194
    %v196 = vunpack.c.h.bf16 %v194
    %v197 = vsub.f32 %v192, %v195
    %v198 = vsub.f32 %v193, %v196
    %v199 = vpack.c.bf16 %v198, %v197
    %200 = vmatprep.subr.bf16.mxu0 0
    %201 = vmatpush1.bf16.msra.mxu0 %v199
    %202 = vmatprep.subr.bf16.mxu0 0
    %203 = vmatpush1.bf16.msra.mxu0 0
    %204 = vmatprep.subr.bf16.mxu0 0
    %205 = vmatpush1.bf16.msra.mxu0 0
    %206 = vmatprep.subr.bf16.mxu0 0
    %207 = vmatpush1.bf16.msra.mxu0 0
    %208 = vmatprep.subr.bf16.mxu0 0
    %209 = vmatpush1.bf16.msra.mxu0 0
    %210 = vmatprep.subr.bf16.mxu0 0
    %211 = vmatpush1.bf16.msra.mxu0 0
    %212 = vmatprep.subr.bf16.mxu0 0
    %213 = vmatpush1.bf16.msra.mxu0 0
    %214 = vmatprep.subr.bf16.mxu0 0
    %215 = vmatpush1.bf16.msra.mxu0 0
    %216 = vmatprep.subr.bf16.mxu0 0
    %217 = vmatpush1.bf16.msra.mxu0 0
    %218 = vmatprep.subr.bf16.mxu0 0
    %219 = vmatpush1.bf16.msra.mxu0 0
    %220 = vmatprep.subr.bf16.mxu0 0
    %221 = vmatpush1.bf16.msra.mxu0 0
    %222 = vmatprep.subr.bf16.mxu0 0
    %223 = vmatpush1.bf16.msra.mxu0 0
    %224 = vmatprep.subr.bf16.mxu0 0
    %225 = vmatpush1.bf16.msra.mxu0 0
    %226 = vmatprep.subr.bf16.mxu0 0
    %227 = vmatpush1.bf16.msra.mxu0 0
    %228 = vmatprep.subr.bf16.mxu0 0
    %229 = vmatpush1.bf16.msra.mxu0 0
    %230 = vmatprep.subr.bf16.mxu0 0
    %231 = vmatpush1.bf16.msra.mxu0 0
    %232 = vmatprep.mubr.bf16.mxu0 0
    %233 = vmatmul.mubr.bf16.gmra.mrb[0].mxu0 %v60
    %v234 = vpop.f32.mrb[0].mxu0
    %v235 = vadd.f32 0.0, %v234
    %v236 = vpop.f32.mrb[0].mxu0
    %v237 = vpop.f32.mrb[0].mxu0
    %v238 = vadd.f32 0.0, %v237
    %v239 = vpop.f32.mrb[0].mxu0
    %240 = vdwg.mxu0
    %241 = vmatprep.subr.bf16.mxu0 0
    %242 = vmatpush1.bf16.msra.mxu0 %v194
    %243 = vmatprep.subr.bf16.mxu0 0
    %244 = vmatpush1.bf16.msra.mxu0 0
    %245 = vmatprep.subr.bf16.mxu0 0
    %246 = vmatpush1.bf16.msra.mxu0 0
    %247 = vmatprep.subr.bf16.mxu0 0
    %248 = vmatpush1.bf16.msra.mxu0 0
    %249 = vmatprep.subr.bf16.mxu0 0
    %250 = vmatpush1.bf16.msra.mxu0 0
    %251 = vmatprep.subr.bf16.mxu0 0
    %252 = vmatpush1.bf16.msra.mxu0 0
    %253 = vmatprep.subr.bf16.mxu0 0
    %254 = vmatpush1.bf16.msra.mxu0 0
    %255 = vmatprep.subr.bf16.mxu0 0
    %256 = vmatpush1.bf16.msra.mxu0 0
    %257 = vmatprep.subr.bf16.mxu0 0
    %258 = vmatpush1.bf16.msra.mxu0 0
    %259 = vmatprep.subr.bf16.mxu0 0
    %260 = vmatpush1.bf16.msra.mxu0 0
    %261 = vmatprep.subr.bf16.mxu0 0
    %262 = vmatpush1.bf16.msra.mxu0 0
    %263 = vmatprep.subr.bf16.mxu0 0
    %264 = vmatpush1.bf16.msra.mxu0 0
    %265 = vmatprep.subr.bf16.mxu0 0
    %266 = vmatpush1.bf16.msra.mxu0 0
    %267 = vmatprep.subr.bf16.mxu0 0
    %268 = vmatpush1.bf16.msra.mxu0 0
    %269 = vmatprep.subr.bf16.mxu0 0
    %270 = vmatpush1.bf16.msra.mxu0 0
    %271 = vmatprep.subr.bf16.mxu0 0
    %272 = vmatpush1.bf16.msra.mxu0 0
    %273 = vmatprep.mubr.bf16.mxu0 0
    %274 = vmatmul.mubr.bf16.gmra.mrb[0].mxu0 %v60
    %v275 = vpop.f32.mrb[0].mxu0
    %v276 = vadd.f32 %v235, %v275
    %v277 = vpop.f32.mrb[0].mxu0
    %v278 = vpop.f32.mrb[0].mxu0
    %v279 = vadd.f32 %v238, %v278
    %v280 = vpop.f32.mrb[0].mxu0
    %281 = vdwg.mxu0
    %v282 = vunpack.c.l.bf16 %v199
    %v283 = vunpack.c.h.bf16 %v199
    %v284 = vsub.f32 %v197, %v282
    %v285 = vsub.f32 %v198, %v283
    %v286 = vpack.c.bf16 %v285, %v284
    %287 = vmatprep.subr.bf16.mxu0 0
    %288 = vmatpush1.bf16.msra.mxu0 %v286
    %289 = vmatprep.subr.bf16.mxu0 0
    %290 = vmatpush1.bf16.msra.mxu0 0
    %291 = vmatprep.subr.bf16.mxu0 0
    %292 = vmatpush1.bf16.msra.mxu0 0
    %293 = vmatprep.subr.bf16.mxu0 0
    %294 = vmatpush1.bf16.msra.mxu0 0
    %295 = vmatprep.subr.bf16.mxu0 0
    %296 = vmatpush1.bf16.msra.mxu0 0
    %297 = vmatprep.subr.bf16.mxu0 0
    %298 = vmatpush1.bf16.msra.mxu0 0
    %299 = vmatprep.subr.bf16.mxu0 0
    %300 = vmatpush1.bf16.msra.mxu0 0
    %301 = vmatprep.subr.bf16.mxu0 0
    %302 = vmatpush1.bf16.msra.mxu0 0
    %303 = vmatprep.subr.bf16.mxu0 0
    %304 = vmatpush1.bf16.msra.mxu0 0
    %305 = vmatprep.subr.bf16.mxu0 0
    %306 = vmatpush1.bf16.msra.mxu0 0
    %307 = vmatprep.subr.bf16.mxu0 0
    %308 = vmatpush1.bf16.msra.mxu0 0
    %309 = vmatprep.subr.bf16.mxu0 0
    %310 = vmatpush1.bf16.msra.mxu0 0
    %311 = vmatprep.subr.bf16.mxu0 0
    %312 = vmatpush1.bf16.msra.mxu0 0
    %313 = vmatprep.subr.bf16.mxu0 0
    %314 = vmatpush1.bf16.msra.mxu0 0
    %315 = vmatprep.subr.bf16.mxu0 0
    %316 = vmatpush1.bf16.msra.mxu0 0
    %317 = vmatprep.subr.bf16.mxu0 0
    %318 = vmatpush1.bf16.msra.mxu0 0
    %319 = vmatprep.mubr.bf16.mxu0 0
    %320 = vmatmul.mubr.bf16.gmra.mrb[0].mxu0 %v60
    %v321 = vpop.f32.mrb[0].mxu0
    %v322 = vadd.f32 0.0, %v321
    %v323 = vpop.f32.mrb[0].mxu0
    %v324 = vpop.f32.mrb[0].mxu0
    %v325 = vadd.f32 0.0, %v324
    %v326 = vpop.f32.mrb[0].mxu0
    %327 = vdwg.mxu0
    %v328 = vadd.f32 %v276, %v322
    %v329 = vadd.f32 %v279, %v325
    %v330 = vmul.f32 %v33, %v190
    %v331 = vmul.f32 %v34, %v191
    %v332 = vand.u32 %v38, 1
    %vm333 = vcmp.eq.s32.totalorder %v332, 0
    %334 = vrot.lane.b32.xlu0 %v33, 1
    %v335 = vpop.permute.xlu0 %334
    %336 = vrot.lane.b32.xlu0 %v34, 1
    %v337 = vpop.permute.xlu0 %336
    %338 = vrot.lane.b32.xlu0 %v33, 127
    %v339 = vpop.permute.xlu0 %338
    %340 = vrot.lane.b32.xlu0 %v34, 127
    %v341 = vpop.permute.xlu0 %340
    %342 = vrot.lane.b32.xlu0 %v38, 1
    %v343 = vpop.permute.xlu0 %342
    %vm344 = vcmp.eq.s32.totalorder %v38, 0
    %v345 = vsub.s32 %v38, 1
    %v346 = vsel %vm344, 127, %v345
    %vm347 = vcmp.eq.s32.totalorder %v343, %v346
    %vm348 = vmxor %vm333, %vm347
    %v349 = vsel %vm348, %v335, %v339
    %v350 = vsel %vm348, %v337, %v341
    %v351 = vmul.f32 %v349, %v328
    %v352 = vmul.f32 %v350, %v329
    %v353 = vadd.f32 %v330, %v351
    %v354 = vadd.f32 %v331, %v352
    %355 = vst [vmem:[#allocation5] sm:$0xff] %v353
    %356 = vst [vmem:[#allocation5 + $0x8] sm:$0xff] %v354
    // Predicated region
    $region22: #{rope_pallas.1} parent=1 // pred_check
      _
    $region23: #{rope_pallas.1} parent=1 // pred_check_branch
      %358 = sbr.rel (0) target = $region25
    $region24: #{rope_pallas.1} parent=1 // pred_region
      %s360 = ssub.s32 256, 256
      %361 = vsyncadd [#allocation4], %s360
      %s362 = sshll.u32 [#allocation5], 4
      %s363 = int_to_ptr.vmem [resolvable:$true] %s362
      %368 = dma.vmem_to_hbm [thread:$0]  %s363, 256, %s4, [#allocation4], 128, 128, 8
    $region25: #{rope_pallas.1} parent=1 // pred_fallthru
      _
    // Predicated region
    $region26: #{rope_pallas.1} parent=1 // pred_check
      _
    $region27: #{rope_pallas.1} parent=1 // pred_check_branch
      %370 = sbr.rel (0) target = $region29
    $region28: #{rope_pallas.1} parent=1 // pred_region
      %371 = dma.done [#allocation4], 256
    $region29: #{rope_pallas.1} parent=1 // pred_fallthru
      _
    %372 = vsyncpa [#allocation3], 1
    %373 = vsyncpa [#allocation4], 1

</llo_original>
